<compile_context>
chip_gen: v7x
topology: tpu7x:2x2x1
jax: 0.10.0
libtpu: 0.0.40
codegen_flags: <defaults>
</compile_context>

<pallas_src>
import jax
import jax.numpy as jnp
from jax.experimental import pallas as pl
from jax.experimental.pallas import tpu as pltpu


def _proj_kernel(x_ref, w_ref, b_ref, o_ref):
    # x_ref: (tm, D) row tile of tokens (streamed / pipelined)
    # w_ref: (D, P)  full weight^T, VMEM-resident across all grid steps
    # b_ref: (1, P)  bias, VMEM-resident
    # o_ref: (tm, P) full-width (lane-dense) output tile
    acc = jnp.dot(x_ref[...], w_ref[...], preferred_element_type=jnp.float32)
    o_ref[...] = (acc + b_ref[...]).astype(o_ref.dtype)


def _round_up(x, m):
    return ((x + m - 1) // m) * m


def _choose_row_tile(M, D, P, in_bytes, out_bytes,
                     vmem_budget=12 * 1024 * 1024, tm_cap=512):
    """Pick the M-row tile.

    Budget: resident weight/bias (D*P + P) plus double-buffered streaming
    tiles 2*(tm*D + tm*P).  Kept well under the smallest scoped-VMEM default
    across generations (v5e 16 MiB; v7x physical 64 MiB).  Also prefers >= 8
    grid steps when M is large so the pipeline has depth and v7x's two
    TensorCores both get work on the "parallel" M axis.
    """
    resident = D * P * in_bytes + P * 4
    per_row = 2 * (D * in_bytes + P * out_bytes)
    avail = max(vmem_budget - resident, 2 * 1024 * 1024)
    tm = (avail // per_row // 8) * 8
    tm = max(8, min(tm, tm_cap))
    tm = min(tm, _round_up(pl.cdiv(M, 8), 8))   # keep several grid steps
    return max(tm, 8)


def linear_proj_pallas(x2d, w_t, bias2d, *, out_dtype=None, compute_dtype=None):
    """y = x2d @ w_t + bias2d with Pallas on the MXU.

    x2d: (M, D), w_t: (D, P), bias2d: (1, P).  Returns (M, P) in out_dtype.
    """
    M, D = x2d.shape
    D2, P = w_t.shape
    assert D2 == D and bias2d.shape == (1, P)
    out_dtype = out_dtype or x2d.dtype

    if compute_dtype is not None:
        x2d = x2d.astype(compute_dtype)
        w_t = w_t.astype(compute_dtype)
    bias2d = bias2d.astype(jnp.float32)   # bias added to the f32 accumulator

    in_bytes = jnp.dtype(x2d.dtype).itemsize
    out_bytes = jnp.dtype(out_dtype).itemsize
    tm = _choose_row_tile(M, D, P, in_bytes, out_bytes)

    # Pad M up to a multiple of the row tile (keeps the (8,128) block rules
    # and a clean grid); pad rows are sliced off afterwards.
    Mp = _round_up(M, tm)
    if Mp != M:
        x2d = jnp.pad(x2d, ((0, Mp - M), (0, 0)))

    y = pl.pallas_call(
        _proj_kernel,
        out_shape=jax.ShapeDtypeStruct((Mp, P), out_dtype),
        grid_spec=pltpu.PrefetchScalarGridSpec(
            num_scalar_prefetch=0,
            grid=(Mp // tm,),
            in_specs=[
                pl.BlockSpec((tm, D), lambda i: (i, 0)),   # stream x row tiles
                pl.BlockSpec((D, P), lambda i: (0, 0)),    # weight stays resident
                pl.BlockSpec((1, P), lambda i: (0, 0)),    # bias stays resident
            ],
            out_specs=pl.BlockSpec((tm, P), lambda i: (i, 0)),  # lane-dense full-P
        ),
        compiler_params=pltpu.CompilerParams(
            dimension_semantics=("parallel",),   # M tiles -> megacore on v7x
            vmem_limit_bytes=32 * 1024 * 1024,   # explicit scoped-VMEM cap
        ),
    )(x2d, w_t, bias2d)

    if Mp != M:
        y = y[:M]
    return y


class UnPatchEmbedPallas:
    """JAX/Pallas port of UnPatchEmbed (Linear proj + patch->image)."""

    def __init__(self, img_size=(32, 32), patch_size=(16, 16), out_chans=1,
                 embed_dim=32, key=None, compute_dtype=None):
        self.img_size = img_size
        self.patch_size = patch_size
        self.out_chans = out_chans
        self.embed_dim = embed_dim
        self.compute_dtype = compute_dtype
        self.patch_shape = (img_size[0] // patch_size[0],
                            img_size[1] // patch_size[1])
        self.num_patches = self.patch_shape[0] * self.patch_shape[1]

        p, q = patch_size
        P = out_chans * p * q
        if key is None:
            key = jax.random.PRNGKey(0)
        kw, kb = jax.random.split(key)
        # nn.Linear-layout parameters: weight (out_features, in), bias (out_features,)
        bound = 1.0 / (embed_dim ** 0.5)
        self.weight = jax.random.uniform(
            kw, (P, embed_dim), jnp.float32, -bound, bound)
        self.bias = jax.random.uniform(kb, (P,), jnp.float32, -bound, bound)

        # One-time layout prep: nn.Linear's output-feature index is interpreted
        # by the forward as (p, q, C).  Permute rows to (C, p, q) so the
        # post-kernel rearrangement is a single simple transpose, and store
        # W^T / (1, P) bias so no transpose/reshape happens per forward call.
        w_cpq = (self.weight.reshape(p, q, out_chans, embed_dim)
                 .transpose(2, 0, 1, 3).reshape(P, embed_dim))
        b_cpq = self.bias.reshape(p, q, out_chans).transpose(2, 0, 1).reshape(P)
        self.w_t = jnp.asarray(w_cpq.T)            # (D, P), (C, p, q) ordered
        self.bias2d = jnp.asarray(b_cpq).reshape(1, P)

    def __call__(self, x):
        # x: (B, N, D) -> imgs: (B, C, H, W)
        B, N, D = x.shape
        p, q = self.patch_size
        h = self.img_size[0] // p
        w = self.img_size[1] // q
        C = self.out_chans
        assert N == h * w and D == self.embed_dim

        # Hot path: Linear projection in Pallas (tokens streamed in row tiles).
        x2d = x.reshape(B * N, D)
        y2d = linear_proj_pallas(x2d, self.w_t, self.bias2d,
                                 out_dtype=x.dtype,
                                 compute_dtype=self.compute_dtype)  # (B*N, C*p*q)

        # Layout-only glue: (C, p, q)-ordered features -> NCHW image.
        # TODO(synk): fuse this scatter into the kernel out_spec for configs
        # with img_width % 128 == 0 (review caveat: keep the transpose for W < 128).
        y = y2d.reshape(B, h, w, C, p, q)
        y = jnp.transpose(y, (0, 3, 1, 4, 2, 5))       # -> (B, C, h, p, w, q)
        return y.reshape(B, C, self.img_size[0], self.img_size[1])


def _torch_reference(x, weight, bias, img_size, patch_size, out_chans):
    """Pure-JAX re-implementation of the PyTorch forward (same op order)."""
    B, N, D = x.shape
    p, q = patch_size
    h = img_size[0] // p
    w = img_size[1] // q
    y = x.reshape(B * N, D) @ weight.T + bias               # nn.Linear
    y = y.reshape(B, h, w, p, q, out_chans)                 # (p, q, C) features
    y = jnp.einsum('nhwpqc->nchpwq', y)
    return y.reshape(B, out_chans, img_size[0], img_size[1])


if __name__ == "__main__":
    key = jax.random.PRNGKey(0)
    k_param, k_param2, k_x, k_x2 = jax.random.split(key, 4)

    # --- check 1: small shapes, out_chans > 1 to exercise the (p,q,C) vs
    # (C,p,q) feature-order handling flagged in the review. ---
    B, embed_dim, C = 2, 32, 2
    mod = UnPatchEmbedPallas(img_size=(32, 32), patch_size=(16, 16),
                             out_chans=C, embed_dim=embed_dim, key=k_param)
    x = jax.random.normal(k_x, (B, mod.num_patches, embed_dim), jnp.float32)

    out = jax.block_until_ready(jax.jit(mod.__call__)(x))
    ref = _torch_reference(x, mod.weight, mod.bias, mod.img_size,
                           mod.patch_size, mod.out_chans)
    assert out.shape == (B, C, 32, 32)
    assert jnp.allclose(out, ref, atol=1e-5, rtol=1e-5)

    # --- check 2: M = B*N not a multiple of the row tile (pad path) and
    # multiple pipelined grid steps. ---
    B2, embed_dim2 = 5, 48
    mod2 = UnPatchEmbedPallas(img_size=(32, 32), patch_size=(16, 16),
                              out_chans=1, embed_dim=embed_dim2, key=k_param2)
    x2 = jax.random.normal(k_x2, (B2, mod2.num_patches, embed_dim2), jnp.float32)
    out2 = jax.block_until_ready(jax.jit(mod2.__call__)(x2))
    ref2 = _torch_reference(x2, mod2.weight, mod2.bias, mod2.img_size,
                            mod2.patch_size, mod2.out_chans)
    assert out2.shape == (B2, 1, 32, 32)
    assert jnp.allclose(out2, ref2, atol=1e-5, rtol=1e-5)

    # --- check 3: optional bf16 compute path (inputs/weight cast at the
    # kernel boundary, f32 accumulate); looser tolerance vs the f32 reference. ---
    mod_bf16 = UnPatchEmbedPallas(img_size=(32, 32), patch_size=(16, 16),
                                  out_chans=C, embed_dim=embed_dim,
                                  key=k_param, compute_dtype=jnp.bfloat16)
    out_bf16 = jax.block_until_ready(jax.jit(mod_bf16.__call__)(x))
    assert out_bf16.shape == (B, C, 32, 32)
    assert jnp.allclose(out_bf16, ref, atol=5e-2, rtol=5e-2)

    print("KERNEL_OK")
</pallas_src>

<mosaic_0001>
module attributes {stable_mosaic.version = 11 : i64} {
  func.func @_proj_kernel(%arg0: i32, %arg1: memref<8x32xf32, #tpu.memory_space<vmem>>, %arg2: memref<32x512xf32, #tpu.memory_space<vmem>>, %arg3: memref<1x512xf32, #tpu.memory_space<vmem>>, %arg4: memref<8x512xf32, #tpu.memory_space<vmem>>) attributes {dimension_semantics = [#tpu.dimension_semantics<parallel>], iteration_bounds = array<i64: 1>, scalar_prefetch = 0 : i64, scratch_operands = 0 : i64, tpu.core_type = #tpu.core_type<tc>, window_params = [{transform_indices = @transform_0, window_bounds = array<i64: 8, 32>}, {pipeline_mode = #tpu.pipeline_mode<synchronous>, transform_indices = @transform_1, window_bounds = array<i64: 32, 512>}, {pipeline_mode = #tpu.pipeline_mode<synchronous>, transform_indices = @transform_2, window_bounds = array<i64: 1, 512>}, {transform_indices = @transform_3, window_bounds = array<i64: 8, 512>}]} {
    %c0 = arith.constant 0 : index
    %c0_0 = arith.constant 0 : index
    %0 = vector.load %arg1[%c0, %c0_0] : memref<8x32xf32, #tpu.memory_space<vmem>>, vector<8x32xf32>
    %c0_1 = arith.constant 0 : index
    %c0_2 = arith.constant 0 : index
    %1 = vector.load %arg2[%c0_1, %c0_2] : memref<32x512xf32, #tpu.memory_space<vmem>>, vector<32x512xf32>
    %cst = arith.constant dense<0.000000e+00> : vector<8x512xf32>
    %2 = tpu.matmul %0, %1, %cst {dimension_numbers = #tpu.dot_dimension_numbers<[1], [0], [0], [1], [0, 0, 1, 1], [], []>} : vector<8x32xf32>, vector<32x512xf32>, vector<8x512xf32> -> vector<8x512xf32>
    %c0_3 = arith.constant 0 : index
    %c0_4 = arith.constant 0 : index
    %3 = vector.load %arg3[%c0_3, %c0_4] : memref<1x512xf32, #tpu.memory_space<vmem>>, vector<1x512xf32>
    %4 = vector.broadcast %3 : vector<1x512xf32> to vector<8x512xf32>
    %5 = arith.addf %2, %4 : vector<8x512xf32>
    %c0_5 = arith.constant 0 : index
    %c0_6 = arith.constant 0 : index
    %6 = vector.load %arg4[%c0_5, %c0_6] : memref<8x512xf32, #tpu.memory_space<vmem>>, vector<8x512xf32>
    tpu.vector_store %arg4[%c0_5, %c0_6], %5 {strides = array<i32>} : memref<8x512xf32, #tpu.memory_space<vmem>>, vector<8x512xf32>,
    return
  }
  func.func @transform_0(%arg0: i32) -> (i32, i32) {
    %c0_i32 = arith.constant 0 : i32
    %c0_i32_0 = arith.constant 0 : i32
    return %arg0, %c0_i32 : i32, i32
  }
  func.func @transform_1(%arg0: i32) -> (i32, i32) {
    %c0_i32 = arith.constant 0 : i32
    %c0_i32_0 = arith.constant 0 : i32
    %c0_i32_1 = arith.constant 0 : i32
    return %c0_i32, %c0_i32_0 : i32, i32
  }
  func.func @transform_2(%arg0: i32) -> (i32, i32) {
    %c0_i32 = arith.constant 0 : i32
    %c0_i32_0 = arith.constant 0 : i32
    %c0_i32_1 = arith.constant 0 : i32
    return %c0_i32, %c0_i32_0 : i32, i32
  }
  func.func @transform_3(%arg0: i32) -> (i32, i32) {
    %c0_i32 = arith.constant 0 : i32
    %c0_i32_0 = arith.constant 0 : i32
    return %arg0, %c0_i32 : i32, i32
  }
}

</mosaic_0001>

<llo_original>
// kernel: a_call__.1
$region0: #{a_call__.1}
  #allocation0 [shape = 'u32[]', space=smem, size = 0x4, offset = 0x4, fixed_abs, tag = 'smem constant byte address 0x4 - core index']
  #allocation1 [shape = 'u32[144,128]{1,0:T(1,128)}', space=vmem, size = 0x12000, scoped, tag = 'internal scratch']
  %s0 = inlined_call_operand.hbm [shape: f32[8,32], index: 0, kind: input, shape index: {}]
  %s1 = inlined_call_operand.hbm [shape: f32[32,512], index: 1, kind: input, shape index: {}]
  %s2 = inlined_call_operand.vmem [shape: f32[1,512], index: 2, kind: input, shape index: {}]
  %s3 = inlined_call_operand.vmem [shape: f32[8,512], index: 3, kind: output, shape index: {}]
  %s4 = sld [smem:[#allocation0]]
  $region30: #{a_call__.1} parent=0
    _
  %s6 = ssub.s32 1, %s4
  %s7 = scalar_select 0, %s6, %s4
  $region1: #{a_call__.1} parent=0
    #allocation2 [shape = 'u8[4096]{0}', space=vmem, size = 0x1000, scoped, tag = 'input window, operand 0, single buffered']
    #allocation3 [shape = 's32[1]{0}', space=sflag, size = 0x4, scoped, tag = 'scoped memory for a_call__.1']
    #allocation4 [shape = 'u8[65536]{0}', space=vmem, size = 0x10000, scoped, tag = 'input window, operand 1, single buffered']
    #allocation5 [shape = 's32[1]{0}', space=sflag, size = 0x4, scoped, tag = 'scoped memory for a_call__.1']
    %8 = vsyncpa [#allocation3], 0
    %9 = vsyncpa [#allocation5], 0
    // Predicated region
    $region2: #{a_call__.1} parent=1 // pred_check
      _
    $region3: #{a_call__.1} parent=1 // pred_check_branch
      %11 = sbr.rel (0) target = $region5
    $region4: #{a_call__.1} parent=1 // pred_region
      %s13 = ssub.s32 128, 128
      %14 = vsyncadd [#allocation3], %s13
      %s16 = sshll.u32 [#allocation2], 4
      %s17 = int_to_ptr.vmem [resolvable:$true] %s16
      %19 = dma.hbm_to_vmem [thread:$0]  %s0, 128, %s17, [#allocation3]
    $region5: #{a_call__.1} parent=1 // pred_fallthru
      _
    // Predicated region
    $region6: #{a_call__.1} parent=1 // pred_check
      _
    $region7: #{a_call__.1} parent=1 // pred_check_branch
      %21 = sbr.rel (0) target = $region9
    $region8: #{a_call__.1} parent=1 // pred_region
      %s23 = ssub.s32 2048, 2048
      %24 = vsyncadd [#allocation5], %s23
      %s25 = sshll.u32 [#allocation4], 4
      %s26 = int_to_ptr.vmem [resolvable:$true] %s25
      %31 = dma.hbm_to_vmem [thread:$0]  %s1, 2048, %s26, [#allocation5], 512, 512, 32
    $region9: #{a_call__.1} parent=1 // pred_fallthru
      _
    // Predicated region
    $region10: #{a_call__.1} parent=1 // pred_check
      _
    $region11: #{a_call__.1} parent=1 // pred_check_branch
      %33 = sbr.rel (0) target = $region13
    $region12: #{a_call__.1} parent=1 // pred_region
      _
    $region13: #{a_call__.1} parent=1 // pred_fallthru
      _
    // Predicated region
    $region14: #{a_call__.1} parent=1 // pred_check
      _
    $region15: #{a_call__.1} parent=1 // pred_check_branch
      %35 = sbr.rel (0) target = $region17
    $region16: #{a_call__.1} parent=1 // pred_region
      %36 = dma.done [#allocation3], 128
    $region17: #{a_call__.1} parent=1 // pred_fallthru
      _
    // Predicated region
    $region18: #{a_call__.1} parent=1 // pred_check
      _
    $region19: #{a_call__.1} parent=1 // pred_check_branch
      %38 = sbr.rel (0) target = $region21
    $region20: #{a_call__.1} parent=1 // pred_region
      %39 = dma.done [#allocation5], 2048
    $region21: #{a_call__.1} parent=1 // pred_fallthru
      _
    %v40 = vld [vmem:[#allocation2] sm:$0xff]
    %v41 = vld [vmem:[#allocation4] sm:$0xff]
    %v42 = vld [vmem:[#allocation4 + $0x8] sm:$0xff]
    %v43 = vld [vmem:[#allocation4 + $0x10] sm:$0xff]
    %v44 = vld [vmem:[#allocation4 + $0x18] sm:$0xff]
    %v45 = vld [vmem:[#allocation4 + $0x20] sm:$0xff]
    %v46 = vld [vmem:[#allocation4 + $0x28] sm:$0xff]
    %v47 = vld [vmem:[#allocation4 + $0x30] sm:$0xff]
    %v48 = vld [vmem:[#allocation4 + $0x38] sm:$0xff]
    %v49 = vld [vmem:[#allocation4 + $0x40] sm:$0xff]
    %v50 = vld [vmem:[#allocation4 + $0x48] sm:$0xff]
    %v51 = vld [vmem:[#allocation4 + $0x50] sm:$0xff]
    %v52 = vld [vmem:[#allocation4 + $0x58] sm:$0xff]
    %v53 = vld [vmem:[#allocation4 + $0x60] sm:$0xff]
    %v54 = vld [vmem:[#allocation4 + $0x68] sm:$0xff]
    %v55 = vld [vmem:[#allocation4 + $0x70] sm:$0xff]
    %v56 = vld [vmem:[#allocation4 + $0x78] sm:$0xff]
    %v57 = vld [vmem:[%s2] sm:$0xf]
    %v59 = vlaneseq
    %v60 = vshrl.u32 %v59, 7
    %v61 = vsub.s32 0, %v60
    %v62 = vrot.slane %v57, %v61
    %v63 = vlaneseq
    %v64 = vshrl.u32 %v63, 7
    %v65 = vsub.s32 1, %v64
    %v66 = vrot.slane %v57, %v65
    %v67 = vlaneseq
    %v68 = vshrl.u32 %v67, 7
    %v69 = vsub.s32 2, %v68
    %v70 = vrot.slane %v57, %v69
    %v71 = vlaneseq
    %v72 = vshrl.u32 %v71, 7
    %v73 = vsub.s32 3, %v72
    %v74 = vrot.slane %v57, %v73
    %vm79 = vcmask 261120
    %v81 = vsel %vm79, %v40, 0
    %83 = vmatprep.subr.mxu0 %v42
    %84 = vmatpush1.msra.mxu0 %v41
    %85 = vmatprep.subr.mxu0 %v46
    %86 = vmatpush1.msra.mxu0 %v45
    %87 = vmatprep.subr.mxu0 %v50
    %88 = vmatpush1.msra.mxu0 %v49
    %89 = vmatprep.subr.mxu0 %v54
    %90 = vmatpush1.msra.mxu0 %v53
    %91 = vmatprep.subr.mxu0 0.0
    %92 = vmatpush1.msra.mxu0 0.0
    %93 = vmatprep.subr.mxu0 0.0
    %94 = vmatpush1.msra.mxu0 0.0
    %95 = vmatprep.subr.mxu0 0.0
    %96 = vmatpush1.msra.mxu0 0.0
    %97 = vmatprep.subr.mxu0 0.0
    %98 = vmatpush1.msra.mxu0 0.0
    %99 = vmatprep.subr.mxu0 0.0
    %100 = vmatpush1.msra.mxu0 0.0
    %101 = vmatprep.subr.mxu0 0.0
    %102 = vmatpush1.msra.mxu0 0.0
    %103 = vmatprep.subr.mxu0 0.0
    %104 = vmatpush1.msra.mxu0 0.0
    %105 = vmatprep.subr.mxu0 0.0
    %106 = vmatpush1.msra.mxu0 0.0
    %107 = vmatprep.subr.mxu0 0.0
    %108 = vmatpush1.msra.mxu0 0.0
    %109 = vmatprep.subr.mxu0 0.0
    %110 = vmatpush1.msra.mxu0 0.0
    %111 = vmatprep.subr.mxu0 0.0
    %112 = vmatpush1.msra.mxu0 0.0
    %113 = vmatprep.subr.mxu0 0.0
    %114 = vmatpush1.msra.mxu0 0.0
    %115 = vmatprep.subr.mxu0 0.0
    %116 = vmatpush1.msra.mxu0 0.0
    %117 = vmatprep.subr.mxu0 0.0
    %118 = vmatpush1.msra.mxu0 0.0
    %119 = vmatprep.subr.mxu0 0.0
    %120 = vmatpush1.msra.mxu0 0.0
    %121 = vmatprep.subr.mxu0 0.0
    %122 = vmatpush1.msra.mxu0 0.0
    %123 = vmatprep.subr.mxu0 0.0
    %124 = vmatpush1.msra.mxu0 0.0
    %125 = vmatprep.subr.mxu0 0.0
    %126 = vmatpush1.msra.mxu0 0.0
    %127 = vmatprep.subr.mxu0 0.0
    %128 = vmatpush1.msra.mxu0 0.0
    %129 = vmatprep.subr.mxu0 0.0
    %130 = vmatpush1.msra.mxu0 0.0
    %131 = vmatprep.subr.mxu0 0.0
    %132 = vmatpush1.msra.mxu0 0.0
    %133 = vmatprep.subr.mxu0 0.0
    %134 = vmatpush1.msra.mxu0 0.0
    %135 = vmatprep.subr.mxu0 0.0
    %136 = vmatpush1.msra.mxu0 0.0
    %137 = vmatprep.subr.mxu0 0.0
    %138 = vmatpush1.msra.mxu0 0.0
    %139 = vmatprep.subr.mxu0 0.0
    %140 = vmatpush1.msra.mxu0 0.0
    %141 = vmatprep.subr.mxu0 0.0
    %142 = vmatpush1.msra.mxu0 0.0
    %143 = vmatprep.subr.mxu0 0.0
    %144 = vmatpush1.msra.mxu0 0.0
    %145 = vmatprep.subr.mxu0 0.0
    %146 = vmatpush1.msra.mxu0 0.0
    %147 = vmatprep.mubr.f32.mxu0 0.0
    %148 = vmatmul.mubr.f32.gmra.mrb[0].mxu0 %v81
    %v149 = vpop.f32.mrb[0].mxu0
    %v150 = vadd.f32 %v62, %v149
    %v151 = vpop.f32.mrb[0].mxu0
    %v152 = vadd.f32 %v66, %v151
    %153 = vdwg.mxu0
    %154 = vmatprep.subr.mxu0 %v44
    %155 = vmatpush1.msra.mxu0 %v43
    %156 = vmatprep.subr.mxu0 %v48
    %157 = vmatpush1.msra.mxu0 %v47
    %158 = vmatprep.subr.mxu0 %v52
    %159 = vmatpush1.msra.mxu0 %v51
    %160 = vmatprep.subr.mxu0 %v56
    %161 = vmatpush1.msra.mxu0 %v55
    %162 = vmatprep.subr.mxu0 0.0
    %163 = vmatpush1.msra.mxu0 0.0
    %164 = vmatprep.subr.mxu0 0.0
    %165 = vmatpush1.msra.mxu0 0.0
    %166 = vmatprep.subr.mxu0 0.0
    %167 = vmatpush1.msra.mxu0 0.0
    %168 = vmatprep.subr.mxu0 0.0
    %169 = vmatpush1.msra.mxu0 0.0
    %170 = vmatprep.subr.mxu0 0.0
    %171 = vmatpush1.msra.mxu0 0.0
    %172 = vmatprep.subr.mxu0 0.0
    %173 = vmatpush1.msra.mxu0 0.0
    %174 = vmatprep.subr.mxu0 0.0
    %175 = vmatpush1.msra.mxu0 0.0
    %176 = vmatprep.subr.mxu0 0.0
    %177 = vmatpush1.msra.mxu0 0.0
    %178 = vmatprep.subr.mxu0 0.0
    %179 = vmatpush1.msra.mxu0 0.0
    %180 = vmatprep.subr.mxu0 0.0
    %181 = vmatpush1.msra.mxu0 0.0
    %182 = vmatprep.subr.mxu0 0.0
    %183 = vmatpush1.msra.mxu0 0.0
    %184 = vmatprep.subr.mxu0 0.0
    %185 = vmatpush1.msra.mxu0 0.0
    %186 = vmatprep.subr.mxu0 0.0
    %187 = vmatpush1.msra.mxu0 0.0
    %188 = vmatprep.subr.mxu0 0.0
    %189 = vmatpush1.msra.mxu0 0.0
    %190 = vmatprep.subr.mxu0 0.0
    %191 = vmatpush1.msra.mxu0 0.0
    %192 = vmatprep.subr.mxu0 0.0
    %193 = vmatpush1.msra.mxu0 0.0
    %194 = vmatprep.subr.mxu0 0.0
    %195 = vmatpush1.msra.mxu0 0.0
    %196 = vmatprep.subr.mxu0 0.0
    %197 = vmatpush1.msra.mxu0 0.0
    %198 = vmatprep.subr.mxu0 0.0
    %199 = vmatpush1.msra.mxu0 0.0
    %200 = vmatprep.subr.mxu0 0.0
    %201 = vmatpush1.msra.mxu0 0.0
    %202 = vmatprep.subr.mxu0 0.0
    %203 = vmatpush1.msra.mxu0 0.0
    %204 = vmatprep.subr.mxu0 0.0
    %205 = vmatpush1.msra.mxu0 0.0
    %206 = vmatprep.subr.mxu0 0.0
    %207 = vmatpush1.msra.mxu0 0.0
    %208 = vmatprep.subr.mxu0 0.0
    %209 = vmatpush1.msra.mxu0 0.0
    %210 = vmatprep.subr.mxu0 0.0
    %211 = vmatpush1.msra.mxu0 0.0
    %212 = vmatprep.subr.mxu0 0.0
    %213 = vmatpush1.msra.mxu0 0.0
    %214 = vmatprep.subr.mxu0 0.0
    %215 = vmatpush1.msra.mxu0 0.0
    %216 = vmatprep.subr.mxu0 0.0
    %217 = vmatpush1.msra.mxu0 0.0
    %218 = vmatprep.mubr.f32.mxu0 0.0
    %219 = vmatmul.mubr.f32.gmra.mrb[0].mxu0 %v81
    %v220 = vpop.f32.mrb[0].mxu0
    %v221 = vadd.f32 %v70, %v220
    %v222 = vpop.f32.mrb[0].mxu0
    %v223 = vadd.f32 %v74, %v222
    %224 = vdwg.mxu0
    %225 = vst [vmem:[%s3] sm:$0xff] %v150
    %226 = vst [vmem:[%s3 + $0x8] sm:$0xff] %v152
    %227 = vst [vmem:[%s3 + $0x10] sm:$0xff] %v221
    %228 = vst [vmem:[%s3 + $0x18] sm:$0xff] %v223
    // Predicated region
    $region22: #{a_call__.1} parent=1 // pred_check
      _
    $region23: #{a_call__.1} parent=1 // pred_check_branch
      %230 = sbr.rel (0) target = $region25
    $region24: #{a_call__.1} parent=1 // pred_region
      _
    $region25: #{a_call__.1} parent=1 // pred_fallthru
      _
    // Predicated region
    $region26: #{a_call__.1} parent=1 // pred_check
      _
    $region27: #{a_call__.1} parent=1 // pred_check_branch
      %232 = sbr.rel (0) target = $region29
    $region28: #{a_call__.1} parent=1 // pred_region
      _
    $region29: #{a_call__.1} parent=1 // pred_fallthru
      _
    %233 = vsyncpa [#allocation3], 1
    %234 = vsyncpa [#allocation5], 1

</llo_original>
